<compile_context>
chip_gen: v5e
topology: v5e:2x2
jax: 0.10.0
libtpu: 0.0.40
codegen_flags: <defaults>
</compile_context>

<pallas_src>
import functools

import jax
import jax.numpy as jnp
from jax.experimental import pallas as pl
from jax.experimental.pallas import tpu as pltpu

_LANE = 128       # feature dims padded to the 128-lane vreg width
_SUBLANE = 8      # batch tiles are multiples of the 8-sublane vreg height
_TB_MAX = 1024    # max rows per grid step (working set ~3 MB incl. buffers)
_NEG_BIG = -1e30  # softmax mask value for padded output lanes (kept f32)


def _round_up(n, m):
    return ((n + m - 1) // m) * m


def _cdiv(a, b):
    return (a + b - 1) // b


def _choose_batch_tiling(batch):
    """(tile_rows, num_tiles, padded_rows): balanced tiles, <=_TB_MAX rows each,
    and >=2 grid steps when there is enough work (v7x has 2 TensorCores)."""
    b_p = _round_up(max(batch, _SUBLANE), _SUBLANE)
    min_tiles = 2 if b_p >= 2 * _SUBLANE else 1
    num_tiles = max(_cdiv(b_p, _TB_MAX), min_tiles)
    tb = _round_up(_cdiv(b_p, num_tiles), _SUBLANE)
    num_tiles = _cdiv(b_p, tb)
    return tb, num_tiles, tb * num_tiles


def _policy_net_kernel(x_ref, w1_ref, b1_ref, w2_ref, b2_ref, out_ref):
    """softmax(relu(x @ W1 + b1) @ W2 + b2, axis=-1) for one batch tile."""
    x = x_ref[...].astype(w1_ref.dtype)               # (TB, Din), cast in VMEM

    # Hidden layer: MXU matmul with f32 accumulation, bias + ReLU in f32.
    h = jnp.dot(x, w1_ref[...], preferred_element_type=jnp.float32)
    h = jnp.maximum(h + b1_ref[...], 0.0)             # (TB, H_pad) f32

    # Output layer; padded output lanes carry a -1e30 (f32) bias.
    logits = jnp.dot(h.astype(w2_ref.dtype), w2_ref[...],
                     preferred_element_type=jnp.float32) + b2_ref[...]

    # Numerically-stable softmax over the lane-dense (padded) last axis.
    # Pad lanes: exp(-1e30 - m) == 0 -> zero probability.  Exact division so
    # rows sum to 1 within rounding of the output dtype.
    m = jnp.max(logits, axis=-1, keepdims=True)
    e = jnp.exp(logits - m)
    denom = jnp.sum(e, axis=-1, keepdims=True)
    out_ref[...] = (e / denom).astype(out_ref.dtype)


def prepare_policy_params(w1, b1, w2, b2, *, matmul_dtype=jnp.bfloat16):
    """Pad/cast the static weights ONCE (call outside the rollout loop)."""
    din, hidden = w1.shape
    dout = w2.shape[1]
    hid_p = _round_up(hidden, _LANE)
    dout_p = _round_up(dout, _LANE)

    w1_p = jnp.zeros((din, hid_p), matmul_dtype).at[:, :hidden].set(
        w1.astype(matmul_dtype))                       # K dim left unpadded
    b1_p = jnp.zeros((1, hid_p), jnp.float32).at[:, :hidden].set(
        b1.reshape(1, hidden).astype(jnp.float32))
    w2_p = jnp.zeros((hid_p, dout_p), matmul_dtype).at[:hidden, :dout].set(
        w2.astype(matmul_dtype))
    # Padded output lanes get a huge negative bias (must stay f32).
    b2_p = jnp.full((1, dout_p), _NEG_BIG, jnp.float32).at[:, :dout].set(
        b2.reshape(1, dout).astype(jnp.float32))
    return w1_p, b1_p, w2_p, b2_p


@functools.partial(jax.jit, static_argnames=("out_dim", "out_dtype"))
def policy_network_forward(x, w1_p, b1_p, w2_p, b2_p, *, out_dim,
                           out_dtype=jnp.bfloat16):
    """x: (B, Din) f32 -> (B, out_dim) probabilities (rows sum to ~1)."""
    batch, din = x.shape
    hid_p = w1_p.shape[1]
    dout_p = w2_p.shape[1]

    tb, num_tiles, b_p = _choose_batch_tiling(batch)
    x_in = x if b_p == batch else jnp.pad(x, ((0, b_p - batch), (0, 0)))

    out_p = pl.pallas_call(
        _policy_net_kernel,
        out_shape=jax.ShapeDtypeStruct((b_p, dout_p), out_dtype),
        grid=(num_tiles,),
        in_specs=[
            pl.BlockSpec((tb, din), lambda i: (i, 0)),        # streamed x tiles
            pl.BlockSpec((din, hid_p), lambda i: (0, 0)),     # resident W1
            pl.BlockSpec((1, hid_p), lambda i: (0, 0)),       # resident b1
            pl.BlockSpec((hid_p, dout_p), lambda i: (0, 0)),  # resident W2
            pl.BlockSpec((1, dout_p), lambda i: (0, 0)),      # resident b2
        ],
        out_specs=pl.BlockSpec((tb, dout_p), lambda i: (i, 0)),
        compiler_params=pltpu.CompilerParams(
            dimension_semantics=("parallel",),   # batch tiles shard over TCs
        ),
    )(x_in, w1_p, b1_p, w2_p, b2_p)

    # Padded batch rows / pad lanes are sliced off here; do not consume out_p.
    return out_p[:batch, :out_dim]


if __name__ == "__main__":
    key = jax.random.PRNGKey(0)
    k_in, k1, k2, k3, k4, k5 = jax.random.split(key, 6)

    batch, input_dim, hidden_dim, output_dim = 2, 16, 64, 8

    # Params mimicking nn.Linear's U(-1/sqrt(fan_in), 1/sqrt(fan_in)) init,
    # stored as (in_features, out_features) so the kernel computes x @ W + b.
    bound1 = 1.0 / float(input_dim) ** 0.5
    bound2 = 1.0 / float(hidden_dim) ** 0.5
    x = jax.random.normal(k_in, (batch, input_dim), jnp.float32)
    w1 = jax.random.uniform(k1, (input_dim, hidden_dim), jnp.float32,
                            -bound1, bound1)
    b1 = jax.random.uniform(k2, (hidden_dim,), jnp.float32, -bound1, bound1)
    w2 = jax.random.uniform(k3, (hidden_dim, output_dim), jnp.float32,
                            -bound2, bound2)
    b2 = jax.random.uniform(k4, (output_dim,), jnp.float32, -bound2, bound2)

    # Plain-JAX f32 reference (same math as the PyTorch module).
    def ref_fwd(xv):
        return jax.nn.softmax(jnp.maximum(xv @ w1 + b1, 0.0) @ w2 + b2, axis=-1)

    # --- default path: bf16 MXU matmuls, bf16 output ---
    params_bf16 = prepare_policy_params(w1, b1, w2, b2,
                                        matmul_dtype=jnp.bfloat16)
    probs = jax.block_until_ready(
        policy_network_forward(x, *params_bf16, out_dim=output_dim))
    assert probs.shape == (batch, output_dim)
    p32 = probs.astype(jnp.float32)
    assert jnp.allclose(jnp.sum(p32, axis=-1), 1.0, atol=1e-2)
    assert jnp.allclose(p32, ref_fwd(x), atol=3e-2, rtol=3e-2)

    # --- f32 matmuls + f32 output: tight correctness check ---
    params_f32 = prepare_policy_params(w1, b1, w2, b2,
                                       matmul_dtype=jnp.float32)
    probs_f32 = jax.block_until_ready(
        policy_network_forward(x, *params_f32, out_dim=output_dim,
                               out_dtype=jnp.float32))
    assert jnp.allclose(jnp.sum(probs_f32, axis=-1), 1.0, atol=1e-5)
    assert jnp.allclose(probs_f32, ref_fwd(x), atol=5e-3, rtol=5e-3)

    # --- larger, non-tile-aligned batch: exercises multi-step grid + tail ---
    x_big = jax.random.normal(k5, (50, input_dim), jnp.float32)
    probs_big = jax.block_until_ready(
        policy_network_forward(x_big, *params_f32, out_dim=output_dim,
                               out_dtype=jnp.float32))
    assert probs_big.shape == (50, output_dim)
    assert jnp.allclose(jnp.sum(probs_big, axis=-1), 1.0, atol=1e-5)
    assert jnp.allclose(probs_big, ref_fwd(x_big), atol=5e-3, rtol=5e-3)

    print("KERNEL_OK")
</pallas_src>

<mosaic_0001>
module attributes {stable_mosaic.version = 11 : i64} {
  func.func @_policy_net_kernel(%arg0: i32, %arg1: memref<8x16xf32, #tpu.memory_space<vmem>>, %arg2: memref<16x128xbf16, #tpu.memory_space<vmem>>, %arg3: memref<1x128xf32, #tpu.memory_space<vmem>>, %arg4: memref<128x128xbf16, #tpu.memory_space<vmem>>, %arg5: memref<1x128xf32, #tpu.memory_space<vmem>>, %arg6: memref<8x128xbf16, #tpu.memory_space<vmem>>) attributes {dimension_semantics = [#tpu.dimension_semantics<parallel>], iteration_bounds = array<i64: 1>, scalar_prefetch = 0 : i64, scratch_operands = 0 : i64, tpu.core_type = #tpu.core_type<tc>, window_params = [{transform_indices = @transform_0, window_bounds = array<i64: 8, 16>}, {pipeline_mode = #tpu.pipeline_mode<synchronous>, transform_indices = @transform_1, window_bounds = array<i64: 16, 128>}, {pipeline_mode = #tpu.pipeline_mode<synchronous>, transform_indices = @transform_2, window_bounds = array<i64: 1, 128>}, {pipeline_mode = #tpu.pipeline_mode<synchronous>, transform_indices = @transform_3, window_bounds = array<i64: 128, 128>}, {pipeline_mode = #tpu.pipeline_mode<synchronous>, transform_indices = @transform_4, window_bounds = array<i64: 1, 128>}, {transform_indices = @transform_5, window_bounds = array<i64: 8, 128>}]} {
    %c0 = arith.constant 0 : index
    %c0_0 = arith.constant 0 : index
    %0 = vector.load %arg1[%c0, %c0_0] : memref<8x16xf32, #tpu.memory_space<vmem>>, vector<8x16xf32>
    %1 = arith.truncf %0 : vector<8x16xf32> to vector<8x16xbf16>
    %c0_1 = arith.constant 0 : index
    %c0_2 = arith.constant 0 : index
    %2 = vector.load %arg2[%c0_1, %c0_2] : memref<16x128xbf16, #tpu.memory_space<vmem>>, vector<16x128xbf16>
    %cst = arith.constant dense<0.000000e+00> : vector<8x128xf32>
    %3 = tpu.matmul %1, %2, %cst {dimension_numbers = #tpu.dot_dimension_numbers<[1], [0], [0], [1], [0, 0, 1, 1], [], []>} : vector<8x16xbf16>, vector<16x128xbf16>, vector<8x128xf32> -> vector<8x128xf32>
    %c0_3 = arith.constant 0 : index
    %c0_4 = arith.constant 0 : index
    %4 = vector.load %arg3[%c0_3, %c0_4] : memref<1x128xf32, #tpu.memory_space<vmem>>, vector<1x128xf32>
    %5 = vector.broadcast %4 : vector<1x128xf32> to vector<8x128xf32>
    %6 = arith.addf %3, %5 : vector<8x128xf32>
    %cst_5 = arith.constant 0.000000e+00 : f32
    %7 = vector.broadcast %cst_5 : f32 to vector<8x128xf32>
    %8 = arith.maximumf %6, %7 : vector<8x128xf32>
    %9 = arith.truncf %8 : vector<8x128xf32> to vector<8x128xbf16>
    %c0_6 = arith.constant 0 : index
    %c0_7 = arith.constant 0 : index
    %10 = vector.load %arg4[%c0_6, %c0_7] : memref<128x128xbf16, #tpu.memory_space<vmem>>, vector<128x128xbf16>
    %cst_8 = arith.constant dense<0.000000e+00> : vector<8x128xf32>
    %11 = tpu.matmul %9, %10, %cst_8 {dimension_numbers = #tpu.dot_dimension_numbers<[1], [0], [0], [1], [0, 0, 1, 1], [], []>} : vector<8x128xbf16>, vector<128x128xbf16>, vector<8x128xf32> -> vector<8x128xf32>
    %c0_9 = arith.constant 0 : index
    %c0_10 = arith.constant 0 : index
    %12 = vector.load %arg5[%c0_9, %c0_10] : memref<1x128xf32, #tpu.memory_space<vmem>>, vector<1x128xf32>
    %13 = vector.broadcast %12 : vector<1x128xf32> to vector<8x128xf32>
    %14 = arith.addf %11, %13 : vector<8x128xf32>
    %cst_11 = arith.constant dense<0xFF800000> : vector<8xf32>
    %15 = vector.multi_reduction <maximumf>, %14, %cst_11 [1] : vector<8x128xf32> to vector<8xf32>
    %16 = vector.shape_cast %15 : vector<8xf32> to vector<8x1xf32>
    %17 = vector.broadcast %16 : vector<8x1xf32> to vector<8x128xf32>
    %18 = arith.subf %14, %17 : vector<8x128xf32>
    %19 = math.exp %18 : vector<8x128xf32>
    %cst_12 = arith.constant dense<0.000000e+00> : vector<8xf32>
    %20 = vector.multi_reduction <add>, %19, %cst_12 [1] : vector<8x128xf32> to vector<8xf32>
    %21 = vector.shape_cast %20 : vector<8xf32> to vector<8x1xf32>
    %22 = vector.broadcast %21 : vector<8x1xf32> to vector<8x128xf32>
    %23 = arith.divf %19, %22 : vector<8x128xf32>
    %24 = arith.truncf %23 : vector<8x128xf32> to vector<8x128xbf16>
    %c0_13 = arith.constant 0 : index
    %c0_14 = arith.constant 0 : index
    %25 = vector.load %arg6[%c0_13, %c0_14] : memref<8x128xbf16, #tpu.memory_space<vmem>>, vector<8x128xbf16>
    tpu.vector_store %arg6[%c0_13, %c0_14], %24 {strides = array<i32>} : memref<8x128xbf16, #tpu.memory_space<vmem>>, vector<8x128xbf16>,
    return
  }
  func.func @transform_0(%arg0: i32) -> (i32, i32) {
    %c0_i32 = arith.constant 0 : i32
    %c0_i32_0 = arith.constant 0 : i32
    return %arg0, %c0_i32 : i32, i32
  }
  func.func @transform_1(%arg0: i32) -> (i32, i32) {
    %c0_i32 = arith.constant 0 : i32
    %c0_i32_0 = arith.constant 0 : i32
    %c0_i32_1 = arith.constant 0 : i32
    return %c0_i32, %c0_i32_0 : i32, i32
  }
  func.func @transform_2(%arg0: i32) -> (i32, i32) {
    %c0_i32 = arith.constant 0 : i32
    %c0_i32_0 = arith.constant 0 : i32
    %c0_i32_1 = arith.constant 0 : i32
    return %c0_i32, %c0_i32_0 : i32, i32
  }
  func.func @transform_3(%arg0: i32) -> (i32, i32) {
    %c0_i32 = arith.constant 0 : i32
    %c0_i32_0 = arith.constant 0 : i32
    %c0_i32_1 = arith.constant 0 : i32
    return %c0_i32, %c0_i32_0 : i32, i32
  }
  func.func @transform_4(%arg0: i32) -> (i32, i32) {
    %c0_i32 = arith.constant 0 : i32
    %c0_i32_0 = arith.constant 0 : i32
    %c0_i32_1 = arith.constant 0 : i32
    return %c0_i32, %c0_i32_0 : i32, i32
  }
  func.func @transform_5(%arg0: i32) -> (i32, i32) {
    %c0_i32 = arith.constant 0 : i32
    %c0_i32_0 = arith.constant 0 : i32
    return %arg0, %c0_i32 : i32, i32
  }
}

</mosaic_0001>

<llo_original>
// kernel: policy_network_forward.1
$region0: #{policy_network_forward.1}
  #allocation0 [shape = 'u32[]', space=smem, size = 0x4, offset = 0x4, fixed_abs, tag = 'smem constant byte address 0x4 - core index']
  #allocation1 [shape = 'u32[72,128]{1,0:T(1,128)}', space=vmem, size = 0x9000, scoped, tag = 'internal scratch']
  %s0 = inlined_call_operand.vmem [shape: f32[8,16], index: 0, kind: input, shape index: {}]
  %s1 = inlined_call_operand.vmem [shape: bf16[16,128], index: 1, kind: input, shape index: {}]
  %s2 = inlined_call_operand.vmem [shape: f32[1,128], index: 2, kind: input, shape index: {}]
  %s3 = inlined_call_operand.hbm [shape: bf16[128,128], index: 3, kind: input, shape index: {}]
  %s4 = inlined_call_operand.vmem [shape: f32[1,128], index: 4, kind: input, shape index: {}]
  %s5 = inlined_call_operand.vmem [shape: bf16[8,128], index: 5, kind: output, shape index: {}]
  %s6 = sld [smem:[#allocation0]]
  $region34: #{policy_network_forward.1} parent=0
    _
  %s8 = ssub.s32 1, %s6
  %s9 = scalar_select 0, %s8, %s6
  $region1: #{policy_network_forward.1} parent=0
    #allocation2 [shape = 'u8[32768]{0}', space=vmem, size = 0x8000, scoped, tag = 'input window, operand 3, single buffered']
    #allocation3 [shape = 's32[1]{0}', space=sflag, size = 0x4, scoped, tag = 'scoped memory for policy_network_forward.1']
    %10 = vsyncpa [#allocation3], 0
    // Predicated region
    $region2: #{policy_network_forward.1} parent=1 // pred_check
      _
    $region3: #{policy_network_forward.1} parent=1 // pred_check_branch
      %12 = sbr.rel (0) target = $region5
    $region4: #{policy_network_forward.1} parent=1 // pred_region
      _
    $region5: #{policy_network_forward.1} parent=1 // pred_fallthru
      _
    // Predicated region
    $region6: #{policy_network_forward.1} parent=1 // pred_check
      _
    $region7: #{policy_network_forward.1} parent=1 // pred_check_branch
      %14 = sbr.rel (0) target = $region9
    $region8: #{policy_network_forward.1} parent=1 // pred_region
      _
    $region9: #{policy_network_forward.1} parent=1 // pred_fallthru
      _
    // Predicated region
    $region10: #{policy_network_forward.1} parent=1 // pred_check
      _
    $region11: #{policy_network_forward.1} parent=1 // pred_check_branch
      %16 = sbr.rel (0) target = $region13
    $region12: #{policy_network_forward.1} parent=1 // pred_region
      _
    $region13: #{policy_network_forward.1} parent=1 // pred_fallthru
      _
    // Predicated region
    $region14: #{policy_network_forward.1} parent=1 // pred_check
      _
    $region15: #{policy_network_forward.1} parent=1 // pred_check_branch
      %18 = sbr.rel (0) target = $region17
    $region16: #{policy_network_forward.1} parent=1 // pred_region
      %20 = vsyncadd [#allocation3], 0
      %s21 = sshll.u32 %s3, 4
      %s22 = int_to_ptr.hbm [resolvable:$true] %s21
      %s23 = sshll.u32 [#allocation2], 4
      %s24 = int_to_ptr.vmem [resolvable:$true] %s23
      %29 = dma.hbm_to_vmem [thread:$0]  %s22, 1024, %s24, [#allocation3], 64, 64, 4
    $region17: #{policy_network_forward.1} parent=1 // pred_fallthru
      _
    // Predicated region
    $region18: #{policy_network_forward.1} parent=1 // pred_check
      _
    $region19: #{policy_network_forward.1} parent=1 // pred_check_branch
      %31 = sbr.rel (0) target = $region21
    $region20: #{policy_network_forward.1} parent=1 // pred_region
      _
    $region21: #{policy_network_forward.1} parent=1 // pred_fallthru
      _
    // Predicated region
    $region22: #{policy_network_forward.1} parent=1 // pred_check
      _
    $region23: #{policy_network_forward.1} parent=1 // pred_check_branch
      %33 = sbr.rel (0) target = $region25
    $region24: #{policy_network_forward.1} parent=1 // pred_region
      %35 = dma.done [#allocation3], 1024
    $region25: #{policy_network_forward.1} parent=1 // pred_fallthru
      _
    %v37 = vld [vmem:[%s0] sm:$0xff]
    %v38 = vpack.c.bf16 %v37, %v37
    %v39 = vld [vmem:[%s1] sm:$0xf]
    %v40 = vld [vmem:[%s1 + $0x4] sm:$0xf]
    %v41 = vld [vmem:[%s2] sm:$0x1]
    %v43 = vperm.slane %v41, 0
    %v47 = vunpack.c.l.b16 %v39
    %v48 = vunpack.c.l.b16 %v40
    %v49 = vpack.c.b16 %v48, %v47
    %vm51 = vcmask 130048
    %v53 = vsel %vm51, %v38, 0
    %55 = vmatpush.bf16.msra.mxu0 0
    %56 = vmatpush.bf16.msra.mxu0 0
    %57 = vmatpush.bf16.msra.mxu0 0
    %58 = vmatpush.bf16.msra.mxu0 0
    %59 = vmatpush.bf16.msra.mxu0 0
    %60 = vmatpush.bf16.msra.mxu0 0
    %61 = vmatpush.bf16.msra.mxu0 0
    %62 = vmatpush.bf16.msra.mxu0 %v49
    %63 = vmatmul.bf16.gmra.mxu0 %v53
    %v64 = vpop.f32.mrf.mxu0
    %v65 = vadd.f32 %v43, %v64
    %v66 = vpop.f32.mrf.mxu0
    %67 = vdwg.mxu0
    %v68 = vmax.f32 %v65, 0.0
    %v69 = vpack.c.bf16 %v68, %v68
    %v70 = vld [vmem:[#allocation2] sm:$0xf]
    %v71 = vld [vmem:[#allocation2 + $0x4] sm:$0xf]
    %v72 = vld [vmem:[#allocation2 + $0x8] sm:$0xf]
    %v73 = vld [vmem:[#allocation2 + $0xc] sm:$0xf]
    %v74 = vld [vmem:[#allocation2 + $0x10] sm:$0xf]
    %v75 = vld [vmem:[#allocation2 + $0x14] sm:$0xf]
    %v76 = vld [vmem:[#allocation2 + $0x18] sm:$0xf]
    %v77 = vld [vmem:[#allocation2 + $0x1c] sm:$0xf]
    %v78 = vld [vmem:[#allocation2 + $0x20] sm:$0xf]
    %v79 = vld [vmem:[#allocation2 + $0x24] sm:$0xf]
    %v80 = vld [vmem:[#allocation2 + $0x28] sm:$0xf]
    %v81 = vld [vmem:[#allocation2 + $0x2c] sm:$0xf]
    %v82 = vld [vmem:[#allocation2 + $0x30] sm:$0xf]
    %v83 = vld [vmem:[#allocation2 + $0x34] sm:$0xf]
    %v84 = vld [vmem:[#allocation2 + $0x38] sm:$0xf]
    %v85 = vld [vmem:[#allocation2 + $0x3c] sm:$0xf]
    %v86 = vld [vmem:[%s4] sm:$0x1]
    %v88 = vperm.slane %v86, 0
    %v106 = vunpack.c.l.b16 %v70
    %v107 = vunpack.c.l.b16 %v71
    %v108 = vunpack.c.l.b16 %v72
    %v109 = vunpack.c.l.b16 %v73
    %v110 = vunpack.c.l.b16 %v74
    %v111 = vunpack.c.l.b16 %v75
    %v112 = vunpack.c.l.b16 %v76
    %v113 = vunpack.c.l.b16 %v77
    %v114 = vunpack.c.l.b16 %v78
    %v115 = vunpack.c.l.b16 %v79
    %v116 = vunpack.c.l.b16 %v80
    %v117 = vunpack.c.l.b16 %v81
    %v118 = vunpack.c.l.b16 %v82
    %v119 = vunpack.c.l.b16 %v83
    %v120 = vunpack.c.l.b16 %v84
    %v121 = vunpack.c.l.b16 %v85
    %v122 = vpack.c.b16 %v107, %v106
    %v123 = vpack.c.b16 %v109, %v108
    %v124 = vpack.c.b16 %v111, %v110
    %v125 = vpack.c.b16 %v113, %v112
    %v126 = vpack.c.b16 %v115, %v114
    %v127 = vpack.c.b16 %v117, %v116
    %v128 = vpack.c.b16 %v119, %v118
    %v129 = vpack.c.b16 %v121, %v120
    %138 = vmatpush.bf16.msra.mxu0 %v129
    %139 = vmatpush.bf16.msra.mxu0 %v128
    %140 = vmatpush.bf16.msra.mxu0 %v127
    %141 = vmatpush.bf16.msra.mxu0 %v126
    %142 = vmatpush.bf16.msra.mxu0 %v125
    %143 = vmatpush.bf16.msra.mxu0 %v124
    %144 = vmatpush.bf16.msra.mxu0 %v123
    %145 = vmatpush.bf16.msra.mxu0 %v122
    %146 = vmatmul.bf16.gmra.mxu0 %v69
    %v147 = vpop.f32.mrf.mxu0
    %v148 = vadd.f32 %v88, %v147
    %v149 = vpop.f32.mrf.mxu0
    %150 = vdwg.mxu0
    %151 = vmax.xlane.f32.xlu0 %v148
    %v152 = vpop.xlane.xlu0 %151
    %v153 = vsub.f32 %v148, %v152
    %v154 = vmul.f32 %v153, 1.442695
    %v155 = vpow.pop %v154
    %156 = vadd.xlane.f32.xlu0 %v155
    %v157 = vpop.xlane.xlu0 %156
    %v158 = vrcp.pop %v157
    %v159 = vmul.f32 %v157, %v158
    %v160 = vsub.f32 1.0, %v159
    %v161 = vmul.f32 %v158, %v160
    %v162 = vadd.f32 %v158, %v161
    %vm163 = vweird.f32 %v157
    %vm164 = vweird.f32 %v158
    %vm165 = vmor %vm163, %vm164
    %v166 = vsel %vm165, %v158, %v162
    %v167 = vand.u32 2147483647, %v157
    %vm168 = vcmp.eq.f32.partialorder %v167, 8.507059e+37
    %v169 = vand.u32 %v157, 2147483648
    %v170 = vor.u32 1.1754944e-38, %v169
    %v171 = vsel %vm168, %v170, %v166
    %v172 = vmul.f32 %v155, %v171
    %v173 = vpack.c.bf16 %v172, %v172
    %174 = vst [vmem:[%s5] sm:$0xf] %v173
    // Predicated region
    $region26: #{policy_network_forward.1} parent=1 // pred_check
      _
    $region27: #{policy_network_forward.1} parent=1 // pred_check_branch
      %176 = sbr.rel (0) target = $region29
    $region28: #{policy_network_forward.1} parent=1 // pred_region
      _
    $region29: #{policy_network_forward.1} parent=1 // pred_fallthru
      _
    // Predicated region
    $region30: #{policy_network_forward.1} parent=1 // pred_check
      _
    $region31: #{policy_network_forward.1} parent=1 // pred_check_branch
      %178 = sbr.rel (0) target = $region33
    $region32: #{policy_network_forward.1} parent=1 // pred_region
      _
    $region33: #{policy_network_forward.1} parent=1 // pred_fallthru
      _
    %179 = vsyncpa [#allocation3], 1

</llo_original>
